<compile_context>
chip_gen: v5e
topology: v5e:2x2
jax: 0.10.0
libtpu: 0.0.40
codegen_flags: <defaults>
</compile_context>

<pallas_src>
import functools

import jax
import jax.numpy as jnp
from jax.experimental import pallas as pl
from jax.experimental.pallas import tpu as pltpu

HID1_PAD = 128  # fc1 output 120 -> 128 lanes (zero-padded)
HID2_PAD = 128  # fc2 output  84 -> 128 lanes (zero-padded)
_VMEM_LIMIT = 32 * 1024 * 1024


def _round_up(x, m):
    return (x + m - 1) // m * m


def _lane_tile(m, max_tile=512):
    """Pick a lane-tile (multiple of 128, <= max_tile) and the padded extent."""
    t = min(max_tile, _round_up(m, 128))
    return t, _round_up(m, t)


# ----------------------------------------------------------------------------
# Pallas kernels
# ----------------------------------------------------------------------------
def conv_pool_kernel(p_ref, w_ref, b_ref, o_ref, *, cout_pad):
    """Fused conv(3x3) + bias + ReLU + maxpool(2x2) on one lane tile.

    p_ref: (Cin*16, MT)        4x4 receptive-field patches, pixels in lanes
    w_ref: (4*cout_pad, Cin*16) conv weights embedded at the 4 pool offsets
    b_ref: (cout_pad, 1)        bias (zero-padded rows)
    o_ref: (cout_pad, MT)       pooled activations
    """
    # one MXU push per tile (instead of 4 small dots)
    y = jnp.dot(w_ref[...], p_ref[...], preferred_element_type=jnp.float32)
    m = jnp.maximum(
        jnp.maximum(y[0 * cout_pad:1 * cout_pad], y[1 * cout_pad:2 * cout_pad]),
        jnp.maximum(y[2 * cout_pad:3 * cout_pad], y[3 * cout_pad:4 * cout_pad]),
    )
    # bias + ReLU hoisted after the pool max (exactly equivalent, 3 fewer VPU passes)
    o_ref[...] = jnp.maximum(m + b_ref[...], 0.0)


def mlp_logsoftmax_kernel(x_ref, w1_ref, b1_ref, w2_ref, b2_ref, w3_ref, b3_ref, o_ref):
    """fc1+ReLU -> fc2+ReLU -> fc3 -> log_softmax(dim=1) on one batch tile."""
    h = jnp.dot(x_ref[...], w1_ref[...], preferred_element_type=jnp.float32) + b1_ref[...]
    h = jnp.maximum(h, 0.0)
    h = jnp.dot(h, w2_ref[...], preferred_element_type=jnp.float32) + b2_ref[...]
    h = jnp.maximum(h, 0.0)
    z = jnp.dot(h, w3_ref[...], preferred_element_type=jnp.float32) + b3_ref[...]
    z = z - jnp.max(z, axis=-1, keepdims=True)
    o_ref[...] = z - jnp.log(jnp.sum(jnp.exp(z), axis=-1, keepdims=True))


# ----------------------------------------------------------------------------
# pallas_call wrappers
# ----------------------------------------------------------------------------
def conv_relu_pool(patches, w_all, b_col, *, cout_pad, m_tile):
    f, m_pad = patches.shape
    grid = (m_pad // m_tile,)
    flops = 2 * 4 * cout_pad * f * m_pad
    bytes_accessed = 4 * (f * m_pad + 4 * cout_pad * f + cout_pad + cout_pad * m_pad)
    return pl.pallas_call(
        functools.partial(conv_pool_kernel, cout_pad=cout_pad),
        out_shape=jax.ShapeDtypeStruct((cout_pad, m_pad), jnp.float32),
        grid=grid,
        in_specs=[
            pl.BlockSpec((f, m_tile), lambda i: (0, i)),          # patch tile (lane-dense)
            pl.BlockSpec((4 * cout_pad, f), lambda i: (0, 0)),    # weights, VMEM-resident
            pl.BlockSpec((cout_pad, 1), lambda i: (0, 0)),        # bias, VMEM-resident
        ],
        out_specs=pl.BlockSpec((cout_pad, m_tile), lambda i: (0, i)),
        compiler_params=pltpu.CompilerParams(
            dimension_semantics=("parallel",),
            vmem_limit_bytes=_VMEM_LIMIT,
        ),
        cost_estimate=pl.CostEstimate(
            flops=flops, transcendentals=0, bytes_accessed=bytes_accessed),
    )(patches, w_all, b_col)


def mlp_logsoftmax(x, w1, b1, w2, b2, w3, b3, *, n_tile):
    n_pad, k = x.shape
    nclass = w3.shape[1]
    grid = (n_pad // n_tile,)
    flops = 2 * n_pad * (k * HID1_PAD + HID1_PAD * HID2_PAD + HID2_PAD * nclass)
    bytes_accessed = 4 * (n_pad * k + k * HID1_PAD + HID1_PAD * HID2_PAD
                          + HID2_PAD * nclass + HID1_PAD + HID2_PAD + nclass
                          + n_pad * nclass)
    return pl.pallas_call(
        mlp_logsoftmax_kernel,
        out_shape=jax.ShapeDtypeStruct((n_pad, nclass), jnp.float32),
        grid=grid,
        in_specs=[
            pl.BlockSpec((n_tile, k), lambda i: (i, 0)),
            pl.BlockSpec((k, HID1_PAD), lambda i: (0, 0)),        # weights resident
            pl.BlockSpec((1, HID1_PAD), lambda i: (0, 0)),
            pl.BlockSpec((HID1_PAD, HID2_PAD), lambda i: (0, 0)),
            pl.BlockSpec((1, HID2_PAD), lambda i: (0, 0)),
            pl.BlockSpec((HID2_PAD, nclass), lambda i: (0, 0)),
            pl.BlockSpec((1, nclass), lambda i: (0, 0)),
        ],
        out_specs=pl.BlockSpec((n_tile, nclass), lambda i: (i, 0)),
        compiler_params=pltpu.CompilerParams(
            dimension_semantics=("parallel",),
            vmem_limit_bytes=_VMEM_LIMIT,
        ),
        cost_estimate=pl.CostEstimate(
            flops=flops, transcendentals=int(n_pad * nclass),
            bytes_accessed=bytes_accessed),
    )(x, w1, b1, w2, b2, w3, b3)


# ----------------------------------------------------------------------------
# Glue: 4x4 stride-2 receptive-field patches and embedded pool-offset weights
# ----------------------------------------------------------------------------
def _pool_patches(x_nchw, out_h, out_w, m_tile):
    """(N, C, H, W) -> (C*16, Mpad) patches; M = N*out_h*out_w, pixels in lanes (n outer).

    patch[(ci, pi, pj), (n, ph, pw)] = x[n, ci, 2*ph + pi, 2*pw + pj]
    """
    n, c, _, _ = x_nchw.shape
    windows = [x_nchw[:, :, pi:pi + 2 * out_h:2, pj:pj + 2 * out_w:2]
               for pi in range(4) for pj in range(4)]               # each (N, C, oh, ow)
    p = jnp.stack(windows, axis=2)                                  # (N, C, 16, oh, ow)
    p = p.reshape(n, c * 16, out_h * out_w)
    p = p.transpose(1, 0, 2).reshape(c * 16, n * out_h * out_w)     # (F, M)
    m = n * out_h * out_w
    m_pad = _round_up(m, m_tile)
    return jnp.pad(p, ((0, 0), (0, m_pad - m))), m


def _embed_pool_weights(w, cout_pad):
    """OIHW (Cout, Cin, 3, 3) -> (4*cout_pad, Cin*16): the 3x3 kernel placed at each of
    the four 2x2-pool offsets inside the 4x4 receptive field (zero-padded rows)."""
    cout = w.shape[0]
    cin = w.shape[1]
    mats = []
    for dy in range(2):
        for dx in range(2):
            wk = jnp.pad(w, ((0, cout_pad - cout), (0, 0), (dy, 1 - dy), (dx, 1 - dx)))
            mats.append(wk.reshape(cout_pad, cin * 16))
    return jnp.concatenate(mats, axis=0)


# ----------------------------------------------------------------------------
# Parameters (deterministic, PyTorch-style U(-1/sqrt(fan_in), 1/sqrt(fan_in)))
# ----------------------------------------------------------------------------
def _uniform(key, shape, bound):
    return jax.random.uniform(key, shape, jnp.float32, -bound, bound)


def init_params(key):
    ks = jax.random.split(key, 10)
    p = {}
    b = 1.0 / (1 * 3 * 3) ** 0.5
    p["w_conv1"] = _uniform(ks[0], (6, 1, 3, 3), b)
    p["b_conv1"] = _uniform(ks[1], (6,), b)
    b = 1.0 / (6 * 3 * 3) ** 0.5
    p["w_conv2"] = _uniform(ks[2], (16, 6, 3, 3), b)
    p["b_conv2"] = _uniform(ks[3], (16,), b)
    b = 1.0 / 400 ** 0.5
    p["w_fc1"] = _uniform(ks[4], (120, 400), b)
    p["b_fc1"] = _uniform(ks[5], (120,), b)
    b = 1.0 / 120 ** 0.5
    p["w_fc2"] = _uniform(ks[6], (84, 120), b)
    p["b_fc2"] = _uniform(ks[7], (84,), b)
    b = 1.0 / 84 ** 0.5
    p["w_fc3"] = _uniform(ks[8], (10, 84), b)
    p["b_fc3"] = _uniform(ks[9], (10,), b)
    return p


# ----------------------------------------------------------------------------
# Full forward pass (Pallas kernels + small XLA glue)
# ----------------------------------------------------------------------------
def cnn_forward(params, x):
    n = x.shape[0]

    # conv1 (1->6, 3x3) + ReLU + max_pool(2,2): 28x28 -> 26x26 -> 13x13
    m1 = n * 13 * 13
    m_tile1, _ = _lane_tile(m1)
    p1, _ = _pool_patches(x, 13, 13, m_tile1)                         # (16, M1pad)
    w1_all = _embed_pool_weights(params["w_conv1"], 8)                # (32, 16)
    b1_col = jnp.pad(params["b_conv1"], (0, 8 - 6))[:, None]          # (8, 1)
    h1 = conv_relu_pool(p1, w1_all, b1_col, cout_pad=8, m_tile=m_tile1)   # (8, M1pad)
    h1 = h1[:6, :m1].reshape(6, n, 13, 13).transpose(1, 0, 2, 3)      # (N, 6, 13, 13)

    # conv2 (6->16, 3x3) + ReLU + max_pool(2,2): 13x13 -> 11x11 -> 5x5
    m2 = n * 5 * 5
    m_tile2, _ = _lane_tile(m2)
    p2, _ = _pool_patches(h1, 5, 5, m_tile2)                          # (96, M2pad)
    w2_all = _embed_pool_weights(params["w_conv2"], 16)               # (64, 96)
    b2_col = params["b_conv2"][:, None]                               # (16, 1)
    h2 = conv_relu_pool(p2, w2_all, b2_col, cout_pad=16, m_tile=m_tile2)  # (16, M2pad)

    # flatten in PyTorch NCHW order: view(-1, 16*5*5)
    feat = h2[:, :m2].reshape(16, n, 25).transpose(1, 0, 2).reshape(n, 400)

    # fc1 -> relu -> fc2 -> relu -> fc3 -> log_softmax (hidden dims padded to 128 lanes)
    n_tile = min(256, _round_up(n, 8))
    n_pad = _round_up(n, n_tile)
    feat = jnp.pad(feat, ((0, n_pad - n), (0, 0)))
    w_fc1 = jnp.pad(params["w_fc1"].T, ((0, 0), (0, HID1_PAD - 120)))
    b_fc1 = jnp.pad(params["b_fc1"], (0, HID1_PAD - 120))[None, :]
    w_fc2 = jnp.pad(params["w_fc2"].T, ((0, HID1_PAD - 120), (0, HID2_PAD - 84)))
    b_fc2 = jnp.pad(params["b_fc2"], (0, HID2_PAD - 84))[None, :]
    w_fc3 = jnp.pad(params["w_fc3"].T, ((0, HID2_PAD - 84), (0, 0)))
    b_fc3 = params["b_fc3"][None, :]
    out = mlp_logsoftmax(feat, w_fc1, b_fc1, w_fc2, b_fc2, w_fc3, b_fc3, n_tile=n_tile)
    return out[:n]


# ----------------------------------------------------------------------------
# Pure-JAX reference (numerical sanity check)
# ----------------------------------------------------------------------------
def reference_forward(params, x):
    hp = jax.lax.Precision.HIGHEST

    def conv(h, w, b):
        y = jax.lax.conv_general_dilated(
            h, w, (1, 1), "VALID",
            dimension_numbers=("NCHW", "OIHW", "NCHW"), precision=hp)
        return y + b[None, :, None, None]

    def pool(h):
        return jax.lax.reduce_window(h, -jnp.inf, jax.lax.max,
                                     (1, 1, 2, 2), (1, 1, 2, 2), "VALID")

    h = pool(jax.nn.relu(conv(x, params["w_conv1"], params["b_conv1"])))
    h = pool(jax.nn.relu(conv(h, params["w_conv2"], params["b_conv2"])))
    h = h.reshape(x.shape[0], -1)
    h = jax.nn.relu(jnp.dot(h, params["w_fc1"].T, precision=hp) + params["b_fc1"])
    h = jax.nn.relu(jnp.dot(h, params["w_fc2"].T, precision=hp) + params["b_fc2"])
    z = jnp.dot(h, params["w_fc3"].T, precision=hp) + params["b_fc3"]
    return jax.nn.log_softmax(z, axis=1)


if __name__ == "__main__":
    key = jax.random.PRNGKey(0)
    k_param, k_x = jax.random.split(key)
    params = init_params(k_param)
    # MNIST-shaped NCHW input (small batch); 28x28 is required by the 16*5*5 flatten.
    x = jax.random.normal(k_x, (2, 1, 28, 28), jnp.float32)

    out = jax.block_until_ready(jax.jit(cnn_forward)(params, x))

    assert out.shape == (2, 10) and out.dtype == jnp.float32
    ref = reference_forward(params, x)
    assert jnp.allclose(out, ref, atol=2e-3, rtol=2e-3)
    assert jnp.allclose(jnp.exp(out).sum(axis=1), 1.0, atol=1e-4)  # valid log-probs
    print("KERNEL_OK")
</pallas_src>

<mosaic_0001>
module attributes {stable_mosaic.version = 11 : i64} {
  func.func @conv_pool_kernel(%arg0: i32, %arg1: memref<16x384xf32, #tpu.memory_space<vmem>>, %arg2: memref<32x16xf32, #tpu.memory_space<vmem>>, %arg3: memref<8x1xf32, #tpu.memory_space<vmem>>, %arg4: memref<8x384xf32, #tpu.memory_space<vmem>>) attributes {dimension_semantics = [#tpu.dimension_semantics<parallel>], iteration_bounds = array<i64: 1>, scalar_prefetch = 0 : i64, scratch_operands = 0 : i64, tpu.core_type = #tpu.core_type<tc>, window_params = [{transform_indices = @transform_0, window_bounds = array<i64: 16, 384>}, {pipeline_mode = #tpu.pipeline_mode<synchronous>, transform_indices = @transform_1, window_bounds = array<i64: 32, 16>}, {pipeline_mode = #tpu.pipeline_mode<synchronous>, transform_indices = @transform_2, window_bounds = array<i64: 8, 1>}, {transform_indices = @transform_3, window_bounds = array<i64: 8, 384>}]} {
    %c0 = arith.constant 0 : index
    %c0_0 = arith.constant 0 : index
    %0 = vector.load %arg2[%c0, %c0_0] : memref<32x16xf32, #tpu.memory_space<vmem>>, vector<32x16xf32>
    %c0_1 = arith.constant 0 : index
    %c0_2 = arith.constant 0 : index
    %1 = vector.load %arg1[%c0_1, %c0_2] : memref<16x384xf32, #tpu.memory_space<vmem>>, vector<16x384xf32>
    %cst = arith.constant dense<0.000000e+00> : vector<32x384xf32>
    %2 = tpu.matmul %0, %1, %cst {dimension_numbers = #tpu.dot_dimension_numbers<[1], [0], [0], [1], [0, 0, 1, 1], [], []>} : vector<32x16xf32>, vector<16x384xf32>, vector<32x384xf32> -> vector<32x384xf32>
    %3 = vector.extract_strided_slice %2 {offsets = [0, 0], sizes = [8, 384], strides = [1, 1]} : vector<32x384xf32> to vector<8x384xf32>
    %4 = vector.extract_strided_slice %2 {offsets = [8, 0], sizes = [8, 384], strides = [1, 1]} : vector<32x384xf32> to vector<8x384xf32>
    %5 = arith.maximumf %3, %4 : vector<8x384xf32>
    %6 = vector.extract_strided_slice %2 {offsets = [16, 0], sizes = [8, 384], strides = [1, 1]} : vector<32x384xf32> to vector<8x384xf32>
    %7 = vector.extract_strided_slice %2 {offsets = [24, 0], sizes = [8, 384], strides = [1, 1]} : vector<32x384xf32> to vector<8x384xf32>
    %8 = arith.maximumf %6, %7 : vector<8x384xf32>
    %9 = arith.maximumf %5, %8 : vector<8x384xf32>
    %c0_3 = arith.constant 0 : index
    %c0_4 = arith.constant 0 : index
    %10 = vector.load %arg3[%c0_3, %c0_4] : memref<8x1xf32, #tpu.memory_space<vmem>>, vector<8x1xf32>
    %11 = vector.broadcast %10 : vector<8x1xf32> to vector<8x384xf32>
    %12 = arith.addf %9, %11 : vector<8x384xf32>
    %cst_5 = arith.constant 0.000000e+00 : f32
    %13 = vector.broadcast %cst_5 : f32 to vector<8x384xf32>
    %14 = arith.maximumf %12, %13 : vector<8x384xf32>
    %c0_6 = arith.constant 0 : index
    %c0_7 = arith.constant 0 : index
    %15 = vector.load %arg4[%c0_6, %c0_7] : memref<8x384xf32, #tpu.memory_space<vmem>>, vector<8x384xf32>
    tpu.vector_store %arg4[%c0_6, %c0_7], %14 {strides = array<i32>} : memref<8x384xf32, #tpu.memory_space<vmem>>, vector<8x384xf32>,
    return
  }
  func.func @transform_0(%arg0: i32) -> (i32, i32) {
    %c0_i32 = arith.constant 0 : i32
    %c0_i32_0 = arith.constant 0 : i32
    return %c0_i32, %arg0 : i32, i32
  }
  func.func @transform_1(%arg0: i32) -> (i32, i32) {
    %c0_i32 = arith.constant 0 : i32
    %c0_i32_0 = arith.constant 0 : i32
    %c0_i32_1 = arith.constant 0 : i32
    return %c0_i32, %c0_i32_0 : i32, i32
  }
  func.func @transform_2(%arg0: i32) -> (i32, i32) {
    %c0_i32 = arith.constant 0 : i32
    %c0_i32_0 = arith.constant 0 : i32
    %c0_i32_1 = arith.constant 0 : i32
    return %c0_i32, %c0_i32_0 : i32, i32
  }
  func.func @transform_3(%arg0: i32) -> (i32, i32) {
    %c0_i32 = arith.constant 0 : i32
    %c0_i32_0 = arith.constant 0 : i32
    return %c0_i32, %arg0 : i32, i32
  }
}

module attributes {stable_mosaic.version = 11 : i64} {
  func.func @conv_pool_kernel(%arg0: i32, %arg1: memref<96x128xf32, #tpu.memory_space<vmem>>, %arg2: memref<64x96xf32, #tpu.memory_space<vmem>>, %arg3: memref<16x1xf32, #tpu.memory_space<vmem>>, %arg4: memref<16x128xf32, #tpu.memory_space<vmem>>) attributes {dimension_semantics = [#tpu.dimension_semantics<parallel>], iteration_bounds = array<i64: 1>, scalar_prefetch = 0 : i64, scratch_operands = 0 : i64, tpu.core_type = #tpu.core_type<tc>, window_params = [{transform_indices = @transform_0, window_bounds = array<i64: 96, 128>}, {pipeline_mode = #tpu.pipeline_mode<synchronous>, transform_indices = @transform_1, window_bounds = array<i64: 64, 96>}, {pipeline_mode = #tpu.pipeline_mode<synchronous>, transform_indices = @transform_2, window_bounds = array<i64: 16, 1>}, {transform_indices = @transform_3, window_bounds = array<i64: 16, 128>}]} {
    %c0 = arith.constant 0 : index
    %c0_0 = arith.constant 0 : index
    %0 = vector.load %arg2[%c0, %c0_0] : memref<64x96xf32, #tpu.memory_space<vmem>>, vector<64x96xf32>
    %c0_1 = arith.constant 0 : index
    %c0_2 = arith.constant 0 : index
    %1 = vector.load %arg1[%c0_1, %c0_2] : memref<96x128xf32, #tpu.memory_space<vmem>>, vector<96x128xf32>
    %cst = arith.constant dense<0.000000e+00> : vector<64x128xf32>
    %2 = tpu.matmul %0, %1, %cst {dimension_numbers = #tpu.dot_dimension_numbers<[1], [0], [0], [1], [0, 0, 1, 1], [], []>} : vector<64x96xf32>, vector<96x128xf32>, vector<64x128xf32> -> vector<64x128xf32>
    %3 = vector.extract_strided_slice %2 {offsets = [0, 0], sizes = [16, 128], strides = [1, 1]} : vector<64x128xf32> to vector<16x128xf32>
    %4 = vector.extract_strided_slice %2 {offsets = [16, 0], sizes = [16, 128], strides = [1, 1]} : vector<64x128xf32> to vector<16x128xf32>
    %5 = arith.maximumf %3, %4 : vector<16x128xf32>
    %6 = vector.extract_strided_slice %2 {offsets = [32, 0], sizes = [16, 128], strides = [1, 1]} : vector<64x128xf32> to vector<16x128xf32>
    %7 = vector.extract_strided_slice %2 {offsets = [48, 0], sizes = [16, 128], strides = [1, 1]} : vector<64x128xf32> to vector<16x128xf32>
    %8 = arith.maximumf %6, %7 : vector<16x128xf32>
    %9 = arith.maximumf %5, %8 : vector<16x128xf32>
    %c0_3 = arith.constant 0 : index
    %c0_4 = arith.constant 0 : index
    %10 = vector.load %arg3[%c0_3, %c0_4] : memref<16x1xf32, #tpu.memory_space<vmem>>, vector<16x1xf32>
    %11 = vector.broadcast %10 : vector<16x1xf32> to vector<16x128xf32>
    %12 = arith.addf %9, %11 : vector<16x128xf32>
    %cst_5 = arith.constant 0.000000e+00 : f32
    %13 = vector.broadcast %cst_5 : f32 to vector<16x128xf32>
    %14 = arith.maximumf %12, %13 : vector<16x128xf32>
    %c0_6 = arith.constant 0 : index
    %c0_7 = arith.constant 0 : index
    %15 = vector.load %arg4[%c0_6, %c0_7] : memref<16x128xf32, #tpu.memory_space<vmem>>, vector<16x128xf32>
    tpu.vector_store %arg4[%c0_6, %c0_7], %14 {strides = array<i32>} : memref<16x128xf32, #tpu.memory_space<vmem>>, vector<16x128xf32>,
    return
  }
  func.func @transform_0(%arg0: i32) -> (i32, i32) {
    %c0_i32 = arith.constant 0 : i32
    %c0_i32_0 = arith.constant 0 : i32
    return %c0_i32, %arg0 : i32, i32
  }
  func.func @transform_1(%arg0: i32) -> (i32, i32) {
    %c0_i32 = arith.constant 0 : i32
    %c0_i32_0 = arith.constant 0 : i32
    %c0_i32_1 = arith.constant 0 : i32
    return %c0_i32, %c0_i32_0 : i32, i32
  }
  func.func @transform_2(%arg0: i32) -> (i32, i32) {
    %c0_i32 = arith.constant 0 : i32
    %c0_i32_0 = arith.constant 0 : i32
    %c0_i32_1 = arith.constant 0 : i32
    return %c0_i32, %c0_i32_0 : i32, i32
  }
  func.func @transform_3(%arg0: i32) -> (i32, i32) {
    %c0_i32 = arith.constant 0 : i32
    %c0_i32_0 = arith.constant 0 : i32
    return %c0_i32, %arg0 : i32, i32
  }
}

module attributes {stable_mosaic.version = 11 : i64} {
  func.func @mlp_logsoftmax_kernel(%arg0: i32, %arg1: memref<8x400xf32, #tpu.memory_space<vmem>>, %arg2: memref<400x128xf32, #tpu.memory_space<vmem>>, %arg3: memref<1x128xf32, #tpu.memory_space<vmem>>, %arg4: memref<128x128xf32, #tpu.memory_space<vmem>>, %arg5: memref<1x128xf32, #tpu.memory_space<vmem>>, %arg6: memref<128x10xf32, #tpu.memory_space<vmem>>, %arg7: memref<1x10xf32, #tpu.memory_space<vmem>>, %arg8: memref<8x10xf32, #tpu.memory_space<vmem>>) attributes {dimension_semantics = [#tpu.dimension_semantics<parallel>], iteration_bounds = array<i64: 1>, scalar_prefetch = 0 : i64, scratch_operands = 0 : i64, tpu.core_type = #tpu.core_type<tc>, window_params = [{transform_indices = @transform_0, window_bounds = array<i64: 8, 400>}, {pipeline_mode = #tpu.pipeline_mode<synchronous>, transform_indices = @transform_1, window_bounds = array<i64: 400, 128>}, {pipeline_mode = #tpu.pipeline_mode<synchronous>, transform_indices = @transform_2, window_bounds = array<i64: 1, 128>}, {pipeline_mode = #tpu.pipeline_mode<synchronous>, transform_indices = @transform_3, window_bounds = array<i64: 128, 128>}, {pipeline_mode = #tpu.pipeline_mode<synchronous>, transform_indices = @transform_4, window_bounds = array<i64: 1, 128>}, {pipeline_mode = #tpu.pipeline_mode<synchronous>, transform_indices = @transform_5, window_bounds = array<i64: 128, 10>}, {pipeline_mode = #tpu.pipeline_mode<synchronous>, transform_indices = @transform_6, window_bounds = array<i64: 1, 10>}, {transform_indices = @transform_7, window_bounds = array<i64: 8, 10>}]} {
    %c0 = arith.constant 0 : index
    %c0_0 = arith.constant 0 : index
    %0 = vector.load %arg1[%c0, %c0_0] : memref<8x400xf32, #tpu.memory_space<vmem>>, vector<8x400xf32>
    %c0_1 = arith.constant 0 : index
    %c0_2 = arith.constant 0 : index
    %1 = vector.load %arg2[%c0_1, %c0_2] : memref<400x128xf32, #tpu.memory_space<vmem>>, vector<400x128xf32>
    %cst = arith.constant dense<0.000000e+00> : vector<8x128xf32>
    %2 = tpu.matmul %0, %1, %cst {dimension_numbers = #tpu.dot_dimension_numbers<[1], [0], [0], [1], [0, 0, 1, 1], [], []>} : vector<8x400xf32>, vector<400x128xf32>, vector<8x128xf32> -> vector<8x128xf32>
    %c0_3 = arith.constant 0 : index
    %c0_4 = arith.constant 0 : index
    %3 = vector.load %arg3[%c0_3, %c0_4] : memref<1x128xf32, #tpu.memory_space<vmem>>, vector<1x128xf32>
    %4 = vector.broadcast %3 : vector<1x128xf32> to vector<8x128xf32>
    %5 = arith.addf %2, %4 : vector<8x128xf32>
    %cst_5 = arith.constant 0.000000e+00 : f32
    %6 = vector.broadcast %cst_5 : f32 to vector<8x128xf32>
    %7 = arith.maximumf %5, %6 : vector<8x128xf32>
    %c0_6 = arith.constant 0 : index
    %c0_7 = arith.constant 0 : index
    %8 = vector.load %arg4[%c0_6, %c0_7] : memref<128x128xf32, #tpu.memory_space<vmem>>, vector<128x128xf32>
    %cst_8 = arith.constant dense<0.000000e+00> : vector<8x128xf32>
    %9 = tpu.matmul %7, %8, %cst_8 {dimension_numbers = #tpu.dot_dimension_numbers<[1], [0], [0], [1], [0, 0, 1, 1], [], []>} : vector<8x128xf32>, vector<128x128xf32>, vector<8x128xf32> -> vector<8x128xf32>
    %c0_9 = arith.constant 0 : index
    %c0_10 = arith.constant 0 : index
    %10 = vector.load %arg5[%c0_9, %c0_10] : memref<1x128xf32, #tpu.memory_space<vmem>>, vector<1x128xf32>
    %11 = vector.broadcast %10 : vector<1x128xf32> to vector<8x128xf32>
    %12 = arith.addf %9, %11 : vector<8x128xf32>
    %cst_11 = arith.constant 0.000000e+00 : f32
    %13 = vector.broadcast %cst_11 : f32 to vector<8x128xf32>
    %14 = arith.maximumf %12, %13 : vector<8x128xf32>
    %c0_12 = arith.constant 0 : index
    %c0_13 = arith.constant 0 : index
    %15 = vector.load %arg6[%c0_12, %c0_13] : memref<128x10xf32, #tpu.memory_space<vmem>>, vector<128x10xf32>
    %cst_14 = arith.constant dense<0.000000e+00> : vector<8x10xf32>
    %16 = tpu.matmul %14, %15, %cst_14 {dimension_numbers = #tpu.dot_dimension_numbers<[1], [0], [0], [1], [0, 0, 1, 1], [], []>} : vector<8x128xf32>, vector<128x10xf32>, vector<8x10xf32> -> vector<8x10xf32>
    %c0_15 = arith.constant 0 : index
    %c0_16 = arith.constant 0 : index
    %17 = vector.load %arg7[%c0_15, %c0_16] : memref<1x10xf32, #tpu.memory_space<vmem>>, vector<1x10xf32>
    %18 = vector.broadcast %17 : vector<1x10xf32> to vector<8x10xf32>
    %19 = arith.addf %16, %18 : vector<8x10xf32>
    %cst_17 = arith.constant dense<0xFF800000> : vector<8xf32>
    %20 = vector.multi_reduction <maximumf>, %19, %cst_17 [1] : vector<8x10xf32> to vector<8xf32>
    %21 = vector.shape_cast %20 : vector<8xf32> to vector<8x1xf32>
    %22 = vector.broadcast %21 : vector<8x1xf32> to vector<8x10xf32>
    %23 = arith.subf %19, %22 : vector<8x10xf32>
    %24 = math.exp %23 : vector<8x10xf32>
    %cst_18 = arith.constant dense<0.000000e+00> : vector<8xf32>
    %25 = vector.multi_reduction <add>, %24, %cst_18 [1] : vector<8x10xf32> to vector<8xf32>
    %26 = vector.shape_cast %25 : vector<8xf32> to vector<8x1xf32>
    %27 = math.log %26 : vector<8x1xf32>
    %28 = vector.broadcast %27 : vector<8x1xf32> to vector<8x10xf32>
    %29 = arith.subf %23, %28 : vector<8x10xf32>
    %c0_19 = arith.constant 0 : index
    %c0_20 = arith.constant 0 : index
    %30 = vector.load %arg8[%c0_19, %c0_20] : memref<8x10xf32, #tpu.memory_space<vmem>>, vector<8x10xf32>
    tpu.vector_store %arg8[%c0_19, %c0_20], %29 {strides = array<i32>} : memref<8x10xf32, #tpu.memory_space<vmem>>, vector<8x10xf32>,
    return
  }
  func.func @transform_0(%arg0: i32) -> (i32, i32) {
    %c0_i32 = arith.constant 0 : i32
    %c0_i32_0 = arith.constant 0 : i32
    return %arg0, %c0_i32 : i32, i32
  }
  func.func @transform_1(%arg0: i32) -> (i32, i32) {
    %c0_i32 = arith.constant 0 : i32
    %c0_i32_0 = arith.constant 0 : i32
    %c0_i32_1 = arith.constant 0 : i32
    return %c0_i32, %c0_i32_0 : i32, i32
  }
  func.func @transform_2(%arg0: i32) -> (i32, i32) {
    %c0_i32 = arith.constant 0 : i32
    %c0_i32_0 = arith.constant 0 : i32
    %c0_i32_1 = arith.constant 0 : i32
    return %c0_i32, %c0_i32_0 : i32, i32
  }
  func.func @transform_3(%arg0: i32) -> (i32, i32) {
    %c0_i32 = arith.constant 0 : i32
    %c0_i32_0 = arith.constant 0 : i32
    %c0_i32_1 = arith.constant 0 : i32
    return %c0_i32, %c0_i32_0 : i32, i32
  }
  func.func @transform_4(%arg0: i32) -> (i32, i32) {
    %c0_i32 = arith.constant 0 : i32
    %c0_i32_0 = arith.constant 0 : i32
    %c0_i32_1 = arith.constant 0 : i32
    return %c0_i32, %c0_i32_0 : i32, i32
  }
  func.func @transform_5(%arg0: i32) -> (i32, i32) {
    %c0_i32 = arith.constant 0 : i32
    %c0_i32_0 = arith.constant 0 : i32
    %c0_i32_1 = arith.constant 0 : i32
    return %c0_i32, %c0_i32_0 : i32, i32
  }
  func.func @transform_6(%arg0: i32) -> (i32, i32) {
    %c0_i32 = arith.constant 0 : i32
    %c0_i32_0 = arith.constant 0 : i32
    %c0_i32_1 = arith.constant 0 : i32
    return %c0_i32, %c0_i32_0 : i32, i32
  }
  func.func @transform_7(%arg0: i32) -> (i32, i32) {
    %c0_i32 = arith.constant 0 : i32
    %c0_i32_0 = arith.constant 0 : i32
    return %arg0, %c0_i32 : i32, i32
  }
}

</mosaic_0001>

<llo_original>
// kernel: cnn_forward.3
$region0: #{cnn_forward.3}
  #allocation0 [shape = 'u32[]', space=smem, size = 0x4, offset = 0x4, fixed_abs, tag = 'smem constant byte address 0x4 - core index']
  #allocation1 [shape = 'u32[72,128]{1,0:T(1,128)}', space=vmem, size = 0x9000, scoped, tag = 'internal scratch']
  %s0 = inlined_call_operand.vmem [shape: f32[16,384], index: 0, kind: input, shape index: {}]
  %s1 = inlined_call_operand.vmem [shape: f32[32,16], index: 1, kind: input, shape index: {}]
  %s2 = inlined_call_operand.vmem [shape: f32[8,1], index: 2, kind: input, shape index: {}]
  %s3 = inlined_call_operand.vmem [shape: f32[8,384], index: 3, kind: output, shape index: {}]
  %s4 = sld [smem:[#allocation0]]
  $region22: #{cnn_forward.3} parent=0
    _
  %s6 = ssub.s32 1, %s4
  %s7 = scalar_select 0, %s6, %s4
  // Predicated region
  $region2: #{cnn_forward.3} parent=0 // pred_check
    _
  $region3: #{cnn_forward.3} parent=0 // pred_check_branch
    %9 = sbr.rel (0) target = $region5
  $region4: #{cnn_forward.3} parent=0 // pred_region
    _
  $region5: #{cnn_forward.3} parent=0 // pred_fallthru
    _
  // Predicated region
  $region6: #{cnn_forward.3} parent=0 // pred_check
    _
  $region7: #{cnn_forward.3} parent=0 // pred_check_branch
    %11 = sbr.rel (0) target = $region9
  $region8: #{cnn_forward.3} parent=0 // pred_region
    _
  $region9: #{cnn_forward.3} parent=0 // pred_fallthru
    _
  // Predicated region
  $region10: #{cnn_forward.3} parent=0 // pred_check
    _
  $region11: #{cnn_forward.3} parent=0 // pred_check_branch
    %13 = sbr.rel (0) target = $region13
  $region12: #{cnn_forward.3} parent=0 // pred_region
    _
  $region13: #{cnn_forward.3} parent=0 // pred_fallthru
    _
  %v14 = vld [vmem:[%s1] sm:$0xff]
  %v15 = vld [vmem:[%s1 + $0x8] sm:$0xff]
  %v16 = vld [vmem:[%s1 + $0x10] sm:$0xff]
  %v17 = vld [vmem:[%s1 + $0x18] sm:$0xff]
  %v18 = vld [vmem:[%s0] sm:$0xff]
  %v19 = vld [vmem:[%s0 + $0x8] sm:$0xff]
  %v20 = vld [vmem:[%s0 + $0x10] sm:$0xff]
  %v21 = vld [vmem:[%s0 + $0x18] sm:$0xff]
  %v22 = vld [vmem:[%s0 + $0x20] sm:$0xff]
  %v23 = vld [vmem:[%s0 + $0x28] sm:$0xff]
  %vm24 = vcmask 130048
  %v26 = vsel %vm24, %v14, 0
  %v29 = vsel %vm24, %v15, 0
  %v32 = vsel %vm24, %v16, 0
  %v35 = vsel %vm24, %v17, 0
  %37 = vmatpush.msra.mxu0 0.0
  %38 = vmatpush.msra.mxu0 0.0
  %39 = vmatpush.msra.mxu0 0.0
  %40 = vmatpush.msra.mxu0 0.0
  %41 = vmatpush.msra.mxu0 0.0
  %42 = vmatpush.msra.mxu0 0.0
  %43 = vmatpush.msra.mxu0 0.0
  %44 = vmatpush.msra.mxu0 0.0
  %45 = vmatpush.msra.mxu0 0.0
  %46 = vmatpush.msra.mxu0 0.0
  %47 = vmatpush.msra.mxu0 0.0
  %48 = vmatpush.msra.mxu0 0.0
  %49 = vmatpush.msra.mxu0 0.0
  %50 = vmatpush.msra.mxu0 0.0
  %51 = vmatpush.msra.mxu0 %v21
  %52 = vmatpush.msra.mxu0 %v18
  %53 = vmatmul.f32.gmra.mxu0 %v26
  %v54 = vpop.f32.mrf.mxu0
  %v55 = vadd.f32 0.0, %v54
  %56 = vmatmul.f32.gmra.mxu0 %v29
  %v57 = vpop.f32.mrf.mxu0
  %v58 = vadd.f32 0.0, %v57
  %59 = vmatmul.f32.gmra.mxu0 %v32
  %v60 = vpop.f32.mrf.mxu0
  %v61 = vadd.f32 0.0, %v60
  %62 = vmatmul.f32.gmra.mxu0 %v35
  %v63 = vpop.f32.mrf.mxu0
  %v64 = vadd.f32 0.0, %v63
  %65 = vdwg.mxu0
  %66 = vmatpush.msra.mxu0 0.0
  %67 = vmatpush.msra.mxu0 0.0
  %68 = vmatpush.msra.mxu0 0.0
  %69 = vmatpush.msra.mxu0 0.0
  %70 = vmatpush.msra.mxu0 0.0
  %71 = vmatpush.msra.mxu0 0.0
  %72 = vmatpush.msra.mxu0 0.0
  %73 = vmatpush.msra.mxu0 0.0
  %74 = vmatpush.msra.mxu0 0.0
  %75 = vmatpush.msra.mxu0 0.0
  %76 = vmatpush.msra.mxu0 0.0
  %77 = vmatpush.msra.mxu0 0.0
  %78 = vmatpush.msra.mxu0 0.0
  %79 = vmatpush.msra.mxu0 0.0
  %80 = vmatpush.msra.mxu0 %v22
  %81 = vmatpush.msra.mxu0 %v19
  %82 = vmatmul.f32.gmra.mxu0 %v26
  %v83 = vpop.f32.mrf.mxu0
  %v84 = vadd.f32 0.0, %v83
  %85 = vmatmul.f32.gmra.mxu0 %v29
  %v86 = vpop.f32.mrf.mxu0
  %v87 = vadd.f32 0.0, %v86
  %88 = vmatmul.f32.gmra.mxu0 %v32
  %v89 = vpop.f32.mrf.mxu0
  %v90 = vadd.f32 0.0, %v89
  %91 = vmatmul.f32.gmra.mxu0 %v35
  %v92 = vpop.f32.mrf.mxu0
  %v93 = vadd.f32 0.0, %v92
  %94 = vdwg.mxu0
  %95 = vmatpush.msra.mxu0 0.0
  %96 = vmatpush.msra.mxu0 0.0
  %97 = vmatpush.msra.mxu0 0.0
  %98 = vmatpush.msra.mxu0 0.0
  %99 = vmatpush.msra.mxu0 0.0
  %100 = vmatpush.msra.mxu0 0.0
  %101 = vmatpush.msra.mxu0 0.0
  %102 = vmatpush.msra.mxu0 0.0
  %103 = vmatpush.msra.mxu0 0.0
  %104 = vmatpush.msra.mxu0 0.0
  %105 = vmatpush.msra.mxu0 0.0
  %106 = vmatpush.msra.mxu0 0.0
  %107 = vmatpush.msra.mxu0 0.0
  %108 = vmatpush.msra.mxu0 0.0
  %109 = vmatpush.msra.mxu0 %v23
  %110 = vmatpush.msra.mxu0 %v20
  %111 = vmatmul.f32.gmra.mxu0 %v26
  %v112 = vpop.f32.mrf.mxu0
  %v113 = vadd.f32 0.0, %v112
  %114 = vmatmul.f32.gmra.mxu0 %v29
  %v115 = vpop.f32.mrf.mxu0
  %v116 = vadd.f32 0.0, %v115
  %117 = vmatmul.f32.gmra.mxu0 %v32
  %v118 = vpop.f32.mrf.mxu0
  %v119 = vadd.f32 0.0, %v118
  %120 = vmatmul.f32.gmra.mxu0 %v35
  %v121 = vpop.f32.mrf.mxu0
  %v122 = vadd.f32 0.0, %v121
  %123 = vdwg.mxu0
  %v124 = vmax.f32 %v55, %v58
  %v125 = vmax.f32 %v84, %v87
  %v126 = vmax.f32 %v113, %v116
  %v127 = vmax.f32 %v61, %v64
  %v128 = vmax.f32 %v90, %v93
  %v129 = vmax.f32 %v119, %v122
  %v130 = vmax.f32 %v124, %v127
  %v131 = vmax.f32 %v125, %v128
  %v132 = vmax.f32 %v126, %v129
  %v133 = vld [vmem:[%s2] sm:$0xff]
  %135 = vset.pattern.permute.xlu0 0
  %136 = vperm.xlu0 %135, %v133
  %v137 = vpop.permute.xlu0 %136
  %v139 = vadd.f32 %v130, %v137
  %v140 = vadd.f32 %v131, %v137
  %v141 = vadd.f32 %v132, %v137
  %v142 = vmax.f32 %v139, 0.0
  %v143 = vmax.f32 %v140, 0.0
  %v144 = vmax.f32 %v141, 0.0
  %145 = vst [vmem:[%s3] sm:$0xff] %v142
  %146 = vst [vmem:[%s3 + $0x8] sm:$0xff] %v143
  %147 = vst [vmem:[%s3 + $0x10] sm:$0xff] %v144
  // Predicated region
  $region14: #{cnn_forward.3} parent=0 // pred_check
    _
  $region15: #{cnn_forward.3} parent=0 // pred_check_branch
    %149 = sbr.rel (0) target = $region17
  $region16: #{cnn_forward.3} parent=0 // pred_region
    _
  $region17: #{cnn_forward.3} parent=0 // pred_fallthru
    _
  // Predicated region
  $region18: #{cnn_forward.3} parent=0 // pred_check
    _
  $region19: #{cnn_forward.3} parent=0 // pred_check_branch
    %151 = sbr.rel (0) target = $region21
  $region20: #{cnn_forward.3} parent=0 // pred_region
    _
  $region21: #{cnn_forward.3} parent=0 // pred_fallthru
    _

// kernel: cnn_forward.4
$region0: #{cnn_forward.4}
  #allocation0 [shape = 'u32[]', space=smem, size = 0x4, offset = 0x4, fixed_abs, tag = 'smem constant byte address 0x4 - core index']
  #allocation1 [shape = 'u32[72,128]{1,0:T(1,128)}', space=vmem, size = 0x9000, scoped, tag = 'internal scratch']
  %s0 = inlined_call_operand.vmem [shape: f32[96,128], index: 0, kind: input, shape index: {}]
  %s1 = inlined_call_operand.vmem [shape: f32[64,96], index: 1, kind: input, shape index: {}]
  %s2 = inlined_call_operand.vmem [shape: f32[16,1], index: 2, kind: input, shape index: {}]
  %s3 = inlined_call_operand.vmem [shape: f32[16,128], index: 3, kind: output, shape index: {}]
  %s4 = sld [smem:[#allocation0]]
  $region22: #{cnn_forward.4} parent=0
    _
  %s6 = ssub.s32 1, %s4
  %s7 = scalar_select 0, %s6, %s4
  // Predicated region
  $region2: #{cnn_forward.4} parent=0 // pred_check
    _
  $region3: #{cnn_forward.4} parent=0 // pred_check_branch
    %9 = sbr.rel (0) target = $region5
  $region4: #{cnn_forward.4} parent=0 // pred_region
    _
  $region5: #{cnn_forward.4} parent=0 // pred_fallthru
    _
  // Predicated region
  $region6: #{cnn_forward.4} parent=0 // pred_check
    _
  $region7: #{cnn_forward.4} parent=0 // pred_check_branch
    %11 = sbr.rel (0) target = $region9
  $region8: #{cnn_forward.4} parent=0 // pred_region
    _
  $region9: #{cnn_forward.4} parent=0 // pred_fallthru
    _
  // Predicated region
  $region10: #{cnn_forward.4} parent=0 // pred_check
    _
  $region11: #{cnn_forward.4} parent=0 // pred_check_branch
    %13 = sbr.rel (0) target = $region13
  $region12: #{cnn_forward.4} parent=0 // pred_region
    _
  $region13: #{cnn_forward.4} parent=0 // pred_fallthru
    _
  %v14 = vld [vmem:[%s1] sm:$0xff]
  %v15 = vld [vmem:[%s1 + $0x8] sm:$0xff]
  %v16 = vld [vmem:[%s1 + $0x10] sm:$0xff]
  %v17 = vld [vmem:[%s1 + $0x18] sm:$0xff]
  %v18 = vld [vmem:[%s1 + $0x20] sm:$0xff]
  %v19 = vld [vmem:[%s1 + $0x28] sm:$0xff]
  %v20 = vld [vmem:[%s1 + $0x30] sm:$0xff]
  %v21 = vld [vmem:[%s1 + $0x38] sm:$0xff]
  %v22 = vld [vmem:[%s0] sm:$0xff]
  %v23 = vld [vmem:[%s0 + $0x8] sm:$0xff]
  %v24 = vld [vmem:[%s0 + $0x10] sm:$0xff]
  %v25 = vld [vmem:[%s0 + $0x18] sm:$0xff]
  %v26 = vld [vmem:[%s0 + $0x20] sm:$0xff]
  %v27 = vld [vmem:[%s0 + $0x28] sm:$0xff]
  %v28 = vld [vmem:[%s0 + $0x30] sm:$0xff]
  %v29 = vld [vmem:[%s0 + $0x38] sm:$0xff]
  %v30 = vld [vmem:[%s0 + $0x40] sm:$0xff]
  %v31 = vld [vmem:[%s0 + $0x48] sm:$0xff]
  %v32 = vld [vmem:[%s0 + $0x50] sm:$0xff]
  %v33 = vld [vmem:[%s0 + $0x58] sm:$0xff]
  %vm34 = vcmask 785408
  %v36 = vsel %vm34, %v14, 0
  %v39 = vsel %vm34, %v15, 0
  %v42 = vsel %vm34, %v16, 0
  %v45 = vsel %vm34, %v17, 0
  %v48 = vsel %vm34, %v18, 0
  %v51 = vsel %vm34, %v19, 0
  %v54 = vsel %vm34, %v20, 0
  %v57 = vsel %vm34, %v21, 0
  %59 = vmatpush.msra.mxu0 0.0
  %60 = vmatpush.msra.mxu0 0.0
  %61 = vmatpush.msra.mxu0 0.0
  %62 = vmatpush.msra.mxu0 0.0
  %63 = vmatpush.msra.mxu0 %v33
  %64 = vmatpush.msra.mxu0 %v32
  %65 = vmatpush.msra.mxu0 %v31
  %66 = vmatpush.msra.mxu0 %v30
  %67 = vmatpush.msra.mxu0 %v29
  %68 = vmatpush.msra.mxu0 %v28
  %69 = vmatpush.msra.mxu0 %v27
  %70 = vmatpush.msra.mxu0 %v26
  %71 = vmatpush.msra.mxu0 %v25
  %72 = vmatpush.msra.mxu0 %v24
  %73 = vmatpush.msra.mxu0 %v23
  %74 = vmatpush.msra.mxu0 %v22
  %75 = vmatmul.f32.gmra.mxu0 %v36
  %v76 = vpop.f32.mrf.mxu0
  %v77 = vadd.f32 0.0, %v76
  %78 = vmatmul.f32.gmra.mxu0 %v39
  %v79 = vpop.f32.mrf.mxu0
  %v80 = vadd.f32 0.0, %v79
  %81 = vmatmul.f32.gmra.mxu0 %v42
  %v82 = vpop.f32.mrf.mxu0
  %v83 = vadd.f32 0.0, %v82
  %84 = vmatmul.f32.gmra.mxu0 %v45
  %v85 = vpop.f32.mrf.mxu0
  %v86 = vadd.f32 0.0, %v85
  %87 = vmatmul.f32.gmra.mxu0 %v48
  %v88 = vpop.f32.mrf.mxu0
  %v89 = vadd.f32 0.0, %v88
  %90 = vmatmul.f32.gmra.mxu0 %v51
  %v91 = vpop.f32.mrf.mxu0
  %v92 = vadd.f32 0.0, %v91
  %93 = vmatmul.f32.gmra.mxu0 %v54
  %v94 = vpop.f32.mrf.mxu0
  %v95 = vadd.f32 0.0, %v94
  %96 = vmatmul.f32.gmra.mxu0 %v57
  %v97 = vpop.f32.mrf.mxu0
  %v98 = vadd.f32 0.0, %v97
  %99 = vdwg.mxu0
  %v100 = vmax.f32 %v77, %v83
  %v101 = vmax.f32 %v80, %v86
  %v102 = vmax.f32 %v89, %v95
  %v103 = vmax.f32 %v92, %v98
  %v104 = vmax.f32 %v100, %v102
  %v105 = vmax.f32 %v101, %v103
  %v106 = vld [vmem:[%s2] sm:$0xff]
  %v107 = vld [vmem:[%s2 + $0x8] sm:$0xff]
  %109 = vset.pattern.permute.xlu0 0
  %110 = vperm.xlu0 %109, %v106
  %v111 = vpop.permute.xlu0 %110
  %114 = vset.pattern.permute.xlu0 0
  %115 = vperm.xlu0 %114, %v107
  %v116 = vpop.permute.xlu0 %115
  %v118 = vadd.f32 %v104, %v111
  %v119 = vadd.f32 %v105, %v116
  %v120 = vmax.f32 %v118, 0.0
  %v121 = vmax.f32 %v119, 0.0
  %122 = vst [vmem:[%s3] sm:$0xff] %v120
  %123 = vst [vmem:[%s3 + $0x8] sm:$0xff] %v121
  // Predicated region
  $region14: #{cnn_forward.4} parent=0 // pred_check
    _
  $region15: #{cnn_forward.4} parent=0 // pred_check_branch
    %125 = sbr.rel (0) target = $region17
  $region16: #{cnn_forward.4} parent=0 // pred_region
    _
  $region17: #{cnn_forward.4} parent=0 // pred_fallthru
    _
  // Predicated region
  $region18: #{cnn_forward.4} parent=0 // pred_check
    _
  $region19: #{cnn_forward.4} parent=0 // pred_check_branch
    %127 = sbr.rel (0) target = $region21
  $region20: #{cnn_forward.4} parent=0 // pred_region
    _
  $region21: #{cnn_forward.4} parent=0 // pred_fallthru
    _

// kernel: cnn_forward.5
$region0: #{cnn_forward.5}
  #allocation0 [shape = 'u32[]', space=smem, size = 0x4, offset = 0x4, fixed_abs, tag = 'smem constant byte address 0x4 - core index']
  #allocation1 [shape = 'u32[72,128]{1,0:T(1,128)}', space=vmem, size = 0x9000, scoped, tag = 'internal scratch']
  %s0 = inlined_call_operand.vmem [shape: f32[8,400], index: 0, kind: input, shape index: {}]
  %s1 = inlined_call_operand.vmem [shape: f32[400,128], index: 1, kind: input, shape index: {}]
  %s2 = inlined_call_operand.vmem [shape: f32[1,128], index: 2, kind: input, shape index: {}]
  %s3 = inlined_call_operand.vmem [shape: f32[128,128], index: 3, kind: input, shape index: {}]
  %s4 = inlined_call_operand.vmem [shape: f32[1,128], index: 4, kind: input, shape index: {}]
  %s5 = inlined_call_operand.vmem [shape: f32[128,10], index: 5, kind: input, shape index: {}]
  %s6 = inlined_call_operand.vmem [shape: f32[1,10], index: 6, kind: input, shape index: {}]
  %s7 = inlined_call_operand.vmem [shape: f32[8,10], index: 7, kind: output, shape index: {}]
  %s8 = sld [smem:[#allocation0]]
  $region38: #{cnn_forward.5} parent=0
    _
  %s10 = ssub.s32 1, %s8
  %s11 = scalar_select 0, %s10, %s8
  // Predicated region
  $region2: #{cnn_forward.5} parent=0 // pred_check
    _
  $region3: #{cnn_forward.5} parent=0 // pred_check_branch
    %13 = sbr.rel (0) target = $region5
  $region4: #{cnn_forward.5} parent=0 // pred_region
    _
  $region5: #{cnn_forward.5} parent=0 // pred_fallthru
    _
  // Predicated region
  $region6: #{cnn_forward.5} parent=0 // pred_check
    _
  $region7: #{cnn_forward.5} parent=0 // pred_check_branch
    %15 = sbr.rel (0) target = $region9
  $region8: #{cnn_forward.5} parent=0 // pred_region
    _
  $region9: #{cnn_forward.5} parent=0 // pred_fallthru
    _
  // Predicated region
  $region10: #{cnn_forward.5} parent=0 // pred_check
    _
  $region11: #{cnn_forward.5} parent=0 // pred_check_branch
    %17 = sbr.rel (0) target = $region13
  $region12: #{cnn_forward.5} parent=0 // pred_region
    _
  $region13: #{cnn_forward.5} parent=0 // pred_fallthru
    _
  // Predicated region
  $region14: #{cnn_forward.5} parent=0 // pred_check
    _
  $region15: #{cnn_forward.5} parent=0 // pred_check_branch
    %19 = sbr.rel (0) target = $region17
  $region16: #{cnn_forward.5} parent=0 // pred_region
    _
  $region17: #{cnn_forward.5} parent=0 // pred_fallthru
    _
  // Predicated region
  $region18: #{cnn_forward.5} parent=0 // pred_check
    _
  $region19: #{cnn_forward.5} parent=0 // pred_check_branch
    %21 = sbr.rel (0) target = $region21
  $region20: #{cnn_forward.5} parent=0 // pred_region
    _
  $region21: #{cnn_forward.5} parent=0 // pred_fallthru
    _
  // Predicated region
  $region22: #{cnn_forward.5} parent=0 // pred_check
    _
  $region23: #{cnn_forward.5} parent=0 // pred_check_branch
    %23 = sbr.rel (0) target = $region25
  $region24: #{cnn_forward.5} parent=0 // pred_region
    _
  $region25: #{cnn_forward.5} parent=0 // pred_fallthru
    _
  // Predicated region
  $region26: #{cnn_forward.5} parent=0 // pred_check
    _
  $region27: #{cnn_forward.5} parent=0 // pred_check_branch
    %25 = sbr.rel (0) target = $region29
  $region28: #{cnn_forward.5} parent=0 // pred_region
    _
  $region29: #{cnn_forward.5} parent=0 // pred_fallthru
    _
  %v26 = vld [vmem:[%s0] sm:$0xff]
  %v27 = vld [vmem:[%s0 + $0x8] sm:$0xff]
  %v28 = vld [vmem:[%s0 + $0x10] sm:$0xff]
  %v29 = vld [vmem:[%s0 + $0x18] sm:$0xff]
  %v30 = vld [vmem:[%s1] sm:$0xff]
  %v31 = vld [vmem:[%s1 + $0x8] sm:$0xff]
  %v32 = vld [vmem:[%s1 + $0x10] sm:$0xff]
  %v33 = vld [vmem:[%s1 + $0x18] sm:$0xff]
  %v34 = vld [vmem:[%s1 + $0x20] sm:$0xff]
  %v35 = vld [vmem:[%s1 + $0x28] sm:$0xff]
  %v36 = vld [vmem:[%s1 + $0x30] sm:$0xff]
  %v37 = vld [vmem:[%s1 + $0x38] sm:$0xff]
  %v38 = vld [vmem:[%s1 + $0x40] sm:$0xff]
  %v39 = vld [vmem:[%s1 + $0x48] sm:$0xff]
  %v40 = vld [vmem:[%s1 + $0x50] sm:$0xff]
  %v41 = vld [vmem:[%s1 + $0x58] sm:$0xff]
  %v42 = vld [vmem:[%s1 + $0x60] sm:$0xff]
  %v43 = vld [vmem:[%s1 + $0x68] sm:$0xff]
  %v44 = vld [vmem:[%s1 + $0x70] sm:$0xff]
  %v45 = vld [vmem:[%s1 + $0x78] sm:$0xff]
  %v46 = vld [vmem:[%s1 + $0x80] sm:$0xff]
  %v47 = vld [vmem:[%s1 + $0x88] sm:$0xff]
  %v48 = vld [vmem:[%s1 + $0x90] sm:$0xff]
  %v49 = vld [vmem:[%s1 + $0x98] sm:$0xff]
  %v50 = vld [vmem:[%s1 + $0xa0] sm:$0xff]
  %v51 = vld [vmem:[%s1 + $0xa8] sm:$0xff]
  %v52 = vld [vmem:[%s1 + $0xb0] sm:$0xff]
  %v53 = vld [vmem:[%s1 + $0xb8] sm:$0xff]
  %v54 = vld [vmem:[%s1 + $0xc0] sm:$0xff]
  %v55 = vld [vmem:[%s1 + $0xc8] sm:$0xff]
  %v56 = vld [vmem:[%s1 + $0xd0] sm:$0xff]
  %v57 = vld [vmem:[%s1 + $0xd8] sm:$0xff]
  %v58 = vld [vmem:[%s1 + $0xe0] sm:$0xff]
  %v59 = vld [vmem:[%s1 + $0xe8] sm:$0xff]
  %v60 = vld [vmem:[%s1 + $0xf0] sm:$0xff]
  %v61 = vld [vmem:[%s1 + $0xf8] sm:$0xff]
  %v62 = vld [vmem:[%s1 + $0x100] sm:$0xff]
  %v63 = vld [vmem:[%s1 + $0x108] sm:$0xff]
  %v64 = vld [vmem:[%s1 + $0x110] sm:$0xff]
  %v65 = vld [vmem:[%s1 + $0x118] sm:$0xff]
  %v66 = vld [vmem:[%s1 + $0x120] sm:$0xff]
  %v67 = vld [vmem:[%s1 + $0x128] sm:$0xff]
  %v68 = vld [vmem:[%s1 + $0x130] sm:$0xff]
  %v69 = vld [vmem:[%s1 + $0x138] sm:$0xff]
  %v70 = vld [vmem:[%s1 + $0x140] sm:$0xff]
  %v71 = vld [vmem:[%s1 + $0x148] sm:$0xff]
  %v72 = vld [vmem:[%s1 + $0x150] sm:$0xff]
  %v73 = vld [vmem:[%s1 + $0x158] sm:$0xff]
  %v74 = vld [vmem:[%s1 + $0x160] sm:$0xff]
  %v75 = vld [vmem:[%s1 + $0x168] sm:$0xff]
  %v76 = vld [vmem:[%s1 + $0x170] sm:$0xff]
  %v77 = vld [vmem:[%s1 + $0x178] sm:$0xff]
  %v78 = vld [vmem:[%s1 + $0x180] sm:$0xff]
  %v79 = vld [vmem:[%s1 + $0x188] sm:$0xff]
  %v80 = vld [vmem:[%s2] sm:$0x1]
  %v82 = vperm.slane %v80, 0
  %vm84 = vcmask 130048
  %v86 = vsel %vm84, %v29, 0
  %88 = vmatpush.msra.mxu0 %v45
  %89 = vmatpush.msra.mxu0 %v44
  %90 = vmatpush.msra.mxu0 %v43
  %91 = vmatpush.msra.mxu0 %v42
  %92 = vmatpush.msra.mxu0 %v41
  %93 = vmatpush.msra.mxu0 %v40
  %94 = vmatpush.msra.mxu0 %v39
  %95 = vmatpush.msra.mxu0 %v38
  %96 = vmatpush.msra.mxu0 %v37
  %97 = vmatpush.msra.mxu0 %v36
  %98 = vmatpush.msra.mxu0 %v35
  %99 = vmatpush.msra.mxu0 %v34
  %100 = vmatpush.msra.mxu0 %v33
  %101 = vmatpush.msra.mxu0 %v32
  %102 = vmatpush.msra.mxu0 %v31
  %103 = vmatpush.msra.mxu0 %v30
  %104 = vmatmul.f32.gmra.mxu0 %v26
  %v105 = vpop.f32.mrf.mxu0
  %v106 = vadd.f32 %v82, %v105
  %107 = vdwg.mxu0
  %108 = vmatpush.msra.mxu0 %v61
  %109 = vmatpush.msra.mxu0 %v60
  %110 = vmatpush.msra.mxu0 %v59
  %111 = vmatpush.msra.mxu0 %v58
  %112 = vmatpush.msra.mxu0 %v57
  %113 = vmatpush.msra.mxu0 %v56
  %114 = vmatpush.msra.mxu0 %v55
  %115 = vmatpush.msra.mxu0 %v54
  %116 = vmatpush.msra.mxu0 %v53
  %117 = vmatpush.msra.mxu0 %v52
  %118 = vmatpush.msra.mxu0 %v51
  %119 = vmatpush.msra.mxu0 %v50
  %120 = vmatpush.msra.mxu0 %v49
  %121 = vmatpush.msra.mxu0 %v48
  %122 = vmatpush.msra.mxu0 %v47
  %123 = vmatpush.msra.mxu0 %v46
  %124 = vmatmul.f32.gmra.mxu0 %v27
  %v125 = vpop.f32.mrf.mxu0
  %v126 = vadd.f32 %v106, %v125
  %127 = vdwg.mxu0
  %128 = vmatpush.msra.mxu0 %v77
  %129 = vmatpush.msra.mxu0 %v76
  %130 = vmatpush.msra.mxu0 %v75
  %131 = vmatpush.msra.mxu0 %v74
  %132 = vmatpush.msra.mxu0 %v73
  %133 = vmatpush.msra.mxu0 %v72
  %134 = vmatpush.msra.mxu0 %v71
  %135 = vmatpush.msra.mxu0 %v70
  %136 = vmatpush.msra.mxu0 %v69
  %137 = vmatpush.msra.mxu0 %v68
  %138 = vmatpush.msra.mxu0 %v67
  %139 = vmatpush.msra.mxu0 %v66
  %140 = vmatpush.msra.mxu0 %v65
  %141 = vmatpush.msra.mxu0 %v64
  %142 = vmatpush.msra.mxu0 %v63
  %143 = vmatpush.msra.mxu0 %v62
  %144 = vmatmul.f32.gmra.mxu0 %v28
  %v145 = vpop.f32.mrf.mxu0
  %v146 = vadd.f32 %v126, %v145
  %147 = vdwg.mxu0
  %148 = vmatpush.msra.mxu0 0.0
  %149 = vmatpush.msra.mxu0 0.0
  %150 = vmatpush.msra.mxu0 0.0
  %151 = vmatpush.msra.mxu0 0.0
  %152 = vmatpush.msra.mxu0 0.0
  %153 = vmatpush.msra.mxu0 0.0
  %154 = vmatpush.msra.mxu0 0.0
  %155 = vmatpush.msra.mxu0 0.0
  %156 = vmatpush.msra.mxu0 0.0
  %157 = vmatpush.msra.mxu0 0.0
  %158 = vmatpush.msra.mxu0 0.0
  %159 = vmatpush.msra.mxu0 0.0
  %160 = vmatpush.msra.mxu0 0.0
  %161 = vmatpush.msra.mxu0 0.0
  %162 = vmatpush.msra.mxu0 %v79
  %163 = vmatpush.msra.mxu0 %v78
  %164 = vmatmul.f32.gmra.mxu0 %v86
  %v165 = vpop.f32.mrf.mxu0
  %v166 = vadd.f32 %v146, %v165
  %167 = vdwg.mxu0
  %v168 = vmax.f32 %v166, 0.0
  %v169 = vld [vmem:[%s3] sm:$0xff]
  %v170 = vld [vmem:[%s3 + $0x8] sm:$0xff]
  %v171 = vld [vmem:[%s3 + $0x10] sm:$0xff]
  %v172 = vld [vmem:[%s3 + $0x18] sm:$0xff]
  %v173 = vld [vmem:[%s3 + $0x20] sm:$0xff]
  %v174 = vld [vmem:[%s3 + $0x28] sm:$0xff]
  %v175 = vld [vmem:[%s3 + $0x30] sm:$0xff]
  %v176 = vld [vmem:[%s3 + $0x38] sm:$0xff]
  %v177 = vld [vmem:[%s3 + $0x40] sm:$0xff]
  %v178 = vld [vmem:[%s3 + $0x48] sm:$0xff]
  %v179 = vld [vmem:[%s3 + $0x50] sm:$0xff]
  %v180 = vld [vmem:[%s3 + $0x58] sm:$0xff]
  %v181 = vld [vmem:[%s3 + $0x60] sm:$0xff]
  %v182 = vld [vmem:[%s3 + $0x68] sm:$0xff]
  %v183 = vld [vmem:[%s3 + $0x70] sm:$0xff]
  %v184 = vld [vmem:[%s3 + $0x78] sm:$0xff]
  %v185 = vld [vmem:[%s4] sm:$0x1]
  %v187 = vperm.slane %v185, 0
  %189 = vmatpush.msra.mxu0 %v184
  %190 = vmatpush.msra.mxu0 %v183
  %191 = vmatpush.msra.mxu0 %v182
  %192 = vmatpush.msra.mxu0 %v181
  %193 = vmatpush.msra.mxu0 %v180
  %194 = vmatpush.msra.mxu0 %v179
  %195 = vmatpush.msra.mxu0 %v178
  %196 = vmatpush.msra.mxu0 %v177
  %197 = vmatpush.msra.mxu0 %v176
  %198 = vmatpush.msra.mxu0 %v175
  %199 = vmatpush.msra.mxu0 %v174
  %200 = vmatpush.msra.mxu0 %v173
  %201 = vmatpush.msra.mxu0 %v172
  %202 = vmatpush.msra.mxu0 %v171
  %203 = vmatpush.msra.mxu0 %v170
  %204 = vmatpush.msra.mxu0 %v169
  %205 = vmatmul.f32.gmra.mxu0 %v168
  %v206 = vpop.f32.mrf.mxu0
  %v207 = vadd.f32 %v187, %v206
  %208 = vdwg.mxu0
  %v209 = vmax.f32 %v207, 0.0
  %v210 = vld [vmem:[%s5] sm:$0xff]
  %v211 = vld [vmem:[%s5 + $0x8] sm:$0xff]
  %v212 = vld [vmem:[%s5 + $0x10] sm:$0xff]
  %v213 = vld [vmem:[%s5 + $0x18] sm:$0xff]
  %v214 = vld [vmem:[%s5 + $0x20] sm:$0xff]
  %v215 = vld [vmem:[%s5 + $0x28] sm:$0xff]
  %v216 = vld [vmem:[%s5 + $0x30] sm:$0xff]
  %v217 = vld [vmem:[%s5 + $0x38] sm:$0xff]
  %v218 = vld [vmem:[%s5 + $0x40] sm:$0xff]
  %v219 = vld [vmem:[%s5 + $0x48] sm:$0xff]
  %v220 = vld [vmem:[%s5 + $0x50] sm:$0xff]
  %v221 = vld [vmem:[%s5 + $0x58] sm:$0xff]
  %v222 = vld [vmem:[%s5 + $0x60] sm:$0xff]
  %v223 = vld [vmem:[%s5 + $0x68] sm:$0xff]
  %v224 = vld [vmem:[%s5 + $0x70] sm:$0xff]
  %v225 = vld [vmem:[%s5 + $0x78] sm:$0xff]
  %v226 = vld [vmem:[%s6] sm:$0x1]
  %v228 = vperm.slane %v226, 0
  %230 = vmatpush.msra.mxu0 %v225
  %231 = vmatpush.msra.mxu0 %v224
  %232 = vmatpush.msra.mxu0 %v223
  %233 = vmatpush.msra.mxu0 %v222
  %234 = vmatpush.msra.mxu0 %v221
  %235 = vmatpush.msra.mxu0 %v220
  %236 = vmatpush.msra.mxu0 %v219
  %237 = vmatpush.msra.mxu0 %v218
  %238 = vmatpush.msra.mxu0 %v217
  %239 = vmatpush.msra.mxu0 %v216
  %240 = vmatpush.msra.mxu0 %v215
  %241 = vmatpush.msra.mxu0 %v214
  %242 = vmatpush.msra.mxu0 %v213
  %243 = vmatpush.msra.mxu0 %v212
  %244 = vmatpush.msra.mxu0 %v211
  %245 = vmatpush.msra.mxu0 %v210
  %246 = vmatmul.f32.gmra.mxu0 %v209
  %v247 = vpop.f32.mrf.mxu0
  %v248 = vadd.f32 %v228, %v247
  %249 = vdwg.mxu0
  %vm250 = vcmask 80896
  %v251 = vsel %vm250, %v248, -inf
  %252 = vmax.xlane.f32.xlu0 %v251
  %v253 = vpop.xlane.xlu0 %252
  %v254 = vsub.f32 %v248, %v253
  %v255 = vmul.f32 %v254, 1.442695
  %v256 = vpow.pop %v255
  %v257 = vsel %vm250, %v256, 0.0
  %258 = vadd.xlane.f32.xlu0 %v257
  %v259 = vpop.xlane.xlu0 %258
  %v260 = vlog2.pop %v259
  %v261 = vmul.f32 %v260, 0.6931472
  %v262 = vsub.f32 %v254, %v261
  %263 = vst.msk [vmem:[%s7] sm:$0xff] %vm250, %v262
  // Predicated region
  $region30: #{cnn_forward.5} parent=0 // pred_check
    _
  $region31: #{cnn_forward.5} parent=0 // pred_check_branch
    %265 = sbr.rel (0) target = $region33
  $region32: #{cnn_forward.5} parent=0 // pred_region
    _
  $region33: #{cnn_forward.5} parent=0 // pred_fallthru
    _
  // Predicated region
  $region34: #{cnn_forward.5} parent=0 // pred_check
    _
  $region35: #{cnn_forward.5} parent=0 // pred_check_branch
    %267 = sbr.rel (0) target = $region37
  $region36: #{cnn_forward.5} parent=0 // pred_region
    _
  $region37: #{cnn_forward.5} parent=0 // pred_fallthru
    _

</llo_original>
